<compile_context>
chip_gen: v5e
topology: v5e:2x2
jax: 0.10.0
libtpu: 0.0.40
codegen_flags: <defaults>
</compile_context>

<pallas_src>
import functools

import jax
import jax.numpy as jnp
from jax.experimental import pallas as pl
from jax.experimental.pallas import tpu as pltpu


def _round_up(a, m):
    return (a + m - 1) // m * m


def _round_down_128(a):
    return max(128, a // 128 * 128)


# ----------------------------------------------------------------------------
# Kernel 1: masked cell-sum (reduction over N, tiled over genes D)
# ----------------------------------------------------------------------------
def _pool_kernel(x_ref, keep_ref, pooled_ref, *, ragged_n):
    ni = pl.program_id(1)                     # cell-tile index (reduction axis, last)

    @pl.when(ni == 0)
    def _init():
        pooled_ref[...] = jnp.zeros_like(pooled_ref)

    keep = keep_ref[...]                      # (B, TN) f32, 1.0 = keep cell
    x = x_ref[...]                            # (B, TN, TD) f32
    if ragged_n:
        # The last N tile reads past the end of X: stale VMEM garbage (possibly NaN/Inf)
        # would survive the 0-multiplier matmul, so select it away explicitly (VPU work
        # is free on this HBM-bound kernel).
        x = jnp.where(keep[:, :, None] != 0.0, x, 0.0)

    # Masked cell-sum on the MXU: (B, 1, TN) @ (B, TN, TD) -> (B, 1, TD).
    part = jnp.einsum("bqn,bnd->bqd", keep[:, None, :], x,
                      preferred_element_type=jnp.float32)
    pooled_ref[...] += part[:, 0, :]


# ----------------------------------------------------------------------------
# Kernel 2: log1p(libnorm) + D-tiled Linear -> ReLU -> Linear
# ----------------------------------------------------------------------------
def _proj_kernel(pooled_ref, scale_ref, w1_ref, b1_ref, w2_ref, b2_ref, out_ref, h_ref):
    di = pl.program_id(0)

    @pl.when(di == 0)
    def _init():
        h_ref[...] = jnp.zeros_like(h_ref)

    # libnorm + lognorm for this gene tile, then accumulate the first matmul over D.
    x = jnp.log1p(pooled_ref[...] * scale_ref[...])                # (B, TD)
    h_ref[...] += jnp.dot(x, w1_ref[...], preferred_element_type=jnp.float32)

    @pl.when(di == pl.num_programs(0) - 1)
    def _finalize():
        h = jnp.maximum(h_ref[...] + b1_ref[...], 0.0)
        out_ref[...] = (jnp.dot(h, w2_ref[...], preferred_element_type=jnp.float32)
                        + b2_ref[...]).astype(out_ref.dtype)


# ----------------------------------------------------------------------------
# Wrapper
# ----------------------------------------------------------------------------
def pseudobulk_forward(x, x_mask, he_mask, w1, b1, w2, b2, *,
                       tile_n=512, tile_d=512,
                       x_vmem_budget_bytes=32 * 1024 * 1024):
    """x: (B, N, D) f32, x_mask: (B, N) bool (True = exclude cell),
    he_mask: (D,) bool (True = highly expressed), w1: (D, M), b1: (M,),
    w2: (M, M), b2: (M,). Returns (B, M) f32."""
    B, N, D = x.shape
    M = w1.shape[1]
    f32 = jnp.float32
    x = x.astype(f32)
    # TODO(synk): optionally stream X (and W1) as bf16 with f32 MXU accumulation to
    # halve the dominant HBM streams when count magnitudes permit.

    # ---- kernel-1 tiles: lane-dense (multiples of 128 or full extent), no X copy ----
    td = D if D <= tile_d else _round_down_128(tile_d)
    tn = N if N <= tile_n else _round_down_128(tile_n)
    # Cap the double-buffered X window so the derivation also fits v7x's 64 MiB VMEM.
    while 2 * B * tn * td * 4 > x_vmem_budget_bytes and (tn > 128 or td > 128):
        if td >= tn and td > 128:
            td = _round_down_128(td // 2)
        elif tn > 128:
            tn = _round_down_128(tn // 2)
        else:
            break

    nd = pl.cdiv(D, td)                       # gene tiles ("parallel"; on v7x this is
    nn = pl.cdiv(N, tn)                       #   the axis sharded over the 2 TCs)

    # Lane-dense keep mask (B, N), zero-padded to whole cell tiles so its blocks never
    # read out of bounds (tiny copy; X itself is streamed unpadded).
    keep = (~x_mask).astype(f32)                                    # (B, N)
    n_keep = nn * tn
    keep_p = keep if n_keep == N else jnp.pad(keep, ((0, 0), (0, n_keep - N)))

    pooled = pl.pallas_call(
        functools.partial(_pool_kernel, ragged_n=(N % tn != 0)),
        out_shape=jax.ShapeDtypeStruct((B, D), f32),
        grid_spec=pltpu.PrefetchScalarGridSpec(
            num_scalar_prefetch=0,
            grid=(nd, nn),                    # genes (parallel), cells (reduction, last)
            in_specs=[
                pl.BlockSpec((B, tn, td), lambda di, ni: (0, ni, di)),   # X tile
                pl.BlockSpec((B, tn), lambda di, ni: (0, ni)),           # keep tile
            ],
            out_specs=pl.BlockSpec((B, td), lambda di, ni: (0, di)),     # resident acc
        ),
        compiler_params=pltpu.CompilerParams(
            dimension_semantics=("parallel", "arbitrary"),
            vmem_limit_bytes=48 * 1024 * 1024,   # v5e/v6e can go higher + larger tiles
        ),
    )(x, keep_p)

    # ---- tiny per-row libnorm scalars, hoisted out of the gene loop ---------
    # (den and the size factor are (B,)-sized reductions over small tensors; computing
    # them here avoids re-summing keep for every gene tile inside kernel 1.)
    den = jnp.maximum(jnp.sum(keep, axis=1, keepdims=True), 1.0)    # kept-cell count
    mean = pooled / den
    sf = jnp.sum(jnp.where(he_mask[None, :], 0.0, mean), axis=1, keepdims=True)
    sf = jnp.where(sf == 0.0, 1.0, sf)        # guard degenerate all-masked rows
    scale = (10000.0 / (den * sf)).astype(f32)                      # (B, 1)

    # ---- kernel 2: log1p + D-tiled projection (W1 streamed, never fully resident) ----
    M_p = _round_up(M, 128)
    td2 = min(_round_up(D, 128), _round_down_128(tile_d))
    D_p = _round_up(D, td2)
    nd2 = D_p // td2

    pooled_p = pooled if D_p == D else jnp.pad(pooled, ((0, 0), (0, D_p - D)))
    w1_p = jnp.zeros((D_p, M_p), f32).at[:D, :M].set(w1.astype(f32))
    b1_p = jnp.zeros((1, M_p), f32).at[:, :M].set(b1.astype(f32))
    w2_p = jnp.zeros((M_p, M_p), f32).at[:M, :M].set(w2.astype(f32))
    b2_p = jnp.zeros((1, M_p), f32).at[:, :M].set(b2.astype(f32))

    out_p = pl.pallas_call(
        _proj_kernel,
        out_shape=jax.ShapeDtypeStruct((B, M_p), f32),
        grid_spec=pltpu.PrefetchScalarGridSpec(
            num_scalar_prefetch=0,
            grid=(nd2,),                      # gene-tile reduction for the first matmul
            in_specs=[
                pl.BlockSpec((B, td2), lambda di: (0, di)),      # pooled tile
                pl.BlockSpec((B, 1), lambda di: (0, 0)),         # per-row libnorm scale
                pl.BlockSpec((td2, M_p), lambda di: (di, 0)),    # W1 tile (streamed)
                pl.BlockSpec((1, M_p), lambda di: (0, 0)),       # b1 (resident)
                pl.BlockSpec((M_p, M_p), lambda di: (0, 0)),     # W2 (resident)
                pl.BlockSpec((1, M_p), lambda di: (0, 0)),       # b2 (resident)
            ],
            out_specs=pl.BlockSpec((B, M_p), lambda di: (0, 0)),
            scratch_shapes=[pltpu.VMEM((B, M_p), f32)],          # h accumulator
        ),
        compiler_params=pltpu.CompilerParams(
            dimension_semantics=("arbitrary",),
            vmem_limit_bytes=48 * 1024 * 1024,
        ),
    )(pooled_p, scale, w1_p, b1_p, w2_p, b2_p)

    return out_p[:, :M]


# ----------------------------------------------------------------------------
# Pure-JAX reference
# ----------------------------------------------------------------------------
def pseudobulk_reference(x, x_mask, he_mask, w1, b1, w2, b2):
    keep = (~x_mask).astype(jnp.float32)[:, :, None]
    pooled = (x * keep).sum(axis=1) / keep.sum(axis=1)
    sf = jnp.sum(jnp.where(he_mask[None, :], 0.0, pooled), axis=1, keepdims=True)
    pooled = pooled / sf * 10000.0
    pooled = jnp.log1p(pooled)
    h = jnp.maximum(pooled @ w1 + b1[None, :], 0.0)
    return h @ w2 + b2[None, :]


if __name__ == "__main__":
    # Small but grid-exercising shapes: ragged N (2 cell tiles), ragged D (2 gene tiles),
    # D-tiled epilogue (2 tiles), padded M.
    B, N, D, M = 2, 200, 192, 96   # batch, cells, input_dim (genes), model_dim

    key = jax.random.PRNGKey(0)
    kx, kw1, kb1, kw2, kb2 = jax.random.split(key, 5)

    # Count-like non-negative inputs.
    x = jax.random.uniform(kx, (B, N, D), dtype=jnp.float32) * 10.0
    # Mask out the trailing cells of each batch element (True = exclude).
    cell_idx = jnp.arange(N)[None, :]
    valid_len = jnp.array([[N - 37], [N - 5]])
    x_mask = cell_idx >= valid_len                       # (B, N) bool
    # First 7 genes are "highly expressed" (excluded from size factors).
    he_mask = jnp.arange(D) < 7                          # (D,) bool

    # Deterministic projection parameters (PyTorch-style uniform init range).
    w1 = jax.random.uniform(kw1, (D, M), minval=-1.0, maxval=1.0) / jnp.sqrt(D)
    b1 = jax.random.uniform(kb1, (M,), minval=-1.0, maxval=1.0) / jnp.sqrt(D)
    w2 = jax.random.uniform(kw2, (M, M), minval=-1.0, maxval=1.0) / jnp.sqrt(M)
    b2 = jax.random.uniform(kb2, (M,), minval=-1.0, maxval=1.0) / jnp.sqrt(M)

    # Small tiles here purely to exercise the multi-tile / ragged-edge code paths;
    # production defaults are tile_n=512, tile_d=512.
    out = pseudobulk_forward(x, x_mask, he_mask, w1, b1, w2, b2,
                             tile_n=128, tile_d=128)
    out = jax.block_until_ready(out)

    ref = pseudobulk_reference(x, x_mask, he_mask, w1, b1, w2, b2)
    assert out.shape == (B, M)
    assert jnp.allclose(out, ref, atol=1e-3, rtol=1e-3), "mismatch vs. reference"

    print("KERNEL_OK")
</pallas_src>

<mosaic_0001>
module attributes {stable_mosaic.version = 11 : i64} {
  func.func @_pool_kernel(%arg0: i32, %arg1: i32, %arg2: memref<2x128x128xf32, #tpu.memory_space<vmem>>, %arg3: memref<2x128xf32, #tpu.memory_space<vmem>>, %arg4: memref<2x128xf32, #tpu.memory_space<vmem>>) attributes {dimension_semantics = [#tpu.dimension_semantics<parallel>, #tpu.dimension_semantics<arbitrary>], iteration_bounds = array<i64: 2, 2>, scalar_prefetch = 0 : i64, scratch_operands = 0 : i64, tpu.core_type = #tpu.core_type<tc>, window_params = [{transform_indices = @transform_0, window_bounds = array<i64: 2, 128, 128>}, {transform_indices = @transform_1, window_bounds = array<i64: 2, 128>}, {transform_indices = @transform_2, window_bounds = array<i64: 2, 128>}]} {
    %c0_i32 = arith.constant 0 : i32
    %0 = arith.cmpi eq, %arg1, %c0_i32 : i32
    %1 = arith.extui %0 : i1 to i32
    %c0_i32_0 = arith.constant 0 : i32
    %2 = arith.cmpi ne, %1, %c0_i32_0 : i32
    scf.if %2 {
      %cst_11 = arith.constant 0.000000e+00 : f32
      %18 = vector.broadcast %cst_11 : f32 to vector<2x128xf32>
      %c0_12 = arith.constant 0 : index
      %c0_13 = arith.constant 0 : index
      %19 = vector.load %arg4[%c0_12, %c0_13] : memref<2x128xf32, #tpu.memory_space<vmem>>, vector<2x128xf32>
      tpu.vector_store %arg4[%c0_12, %c0_13], %18 {strides = array<i32>} : memref<2x128xf32, #tpu.memory_space<vmem>>, vector<2x128xf32>,
    } else {
    }
    %c0 = arith.constant 0 : index
    %c0_1 = arith.constant 0 : index
    %3 = vector.load %arg3[%c0, %c0_1] : memref<2x128xf32, #tpu.memory_space<vmem>>, vector<2x128xf32>
    %c0_2 = arith.constant 0 : index
    %c0_3 = arith.constant 0 : index
    %c0_4 = arith.constant 0 : index
    %4 = vector.load %arg2[%c0_2, %c0_3, %c0_4] : memref<2x128x128xf32, #tpu.memory_space<vmem>>, vector<2x128x128xf32>
    %5 = vector.shape_cast %3 : vector<2x128xf32> to vector<2x128x1xf32>
    %cst = arith.constant 0.000000e+00 : f32
    %6 = vector.broadcast %cst : f32 to vector<2x128x1xf32>
    %7 = arith.cmpf one, %5, %6 : vector<2x128x1xf32>
    %cst_5 = arith.constant 0.000000e+00 : f32
    %8 = vector.shape_cast %7 : vector<2x128x1xi1> to vector<2x128x1xi1>
    %9 = vector.broadcast %8 : vector<2x128x1xi1> to vector<2x128x128xi1>
    %10 = vector.broadcast %cst_5 : f32 to vector<2x128x128xf32>
    %11 = arith.select %9, %4, %10 : vector<2x128x128xi1>, vector<2x128x128xf32>
    %12 = vector.shape_cast %3 : vector<2x128xf32> to vector<2x1x128xf32>
    "tpu.trace_start"() <{level = 10 : i32, message = "bqn,bnd->bqd"}> : () -> ()
    %cst_6 = arith.constant dense<0.000000e+00> : vector<2x1x128xf32>
    %13 = tpu.matmul %12, %11, %cst_6 {dimension_numbers = #tpu.dot_dimension_numbers<[2], [1], [1], [2], [0, 0, 0, 1, 1, 2], [0], [0]>} : vector<2x1x128xf32>, vector<2x128x128xf32>, vector<2x1x128xf32> -> vector<2x1x128xf32>
    "tpu.trace_stop"() : () -> ()
    %c0_7 = arith.constant 0 : index
    %c0_8 = arith.constant 0 : index
    %14 = vector.load %arg4[%c0_7, %c0_8] : memref<2x128xf32, #tpu.memory_space<vmem>>, vector<2x128xf32>
    %15 = vector.shape_cast %13 : vector<2x1x128xf32> to vector<2x128xf32>
    %16 = arith.addf %14, %15 : vector<2x128xf32>
    %c0_9 = arith.constant 0 : index
    %c0_10 = arith.constant 0 : index
    %17 = vector.load %arg4[%c0_9, %c0_10] : memref<2x128xf32, #tpu.memory_space<vmem>>, vector<2x128xf32>
    tpu.vector_store %arg4[%c0_9, %c0_10], %16 {strides = array<i32>} : memref<2x128xf32, #tpu.memory_space<vmem>>, vector<2x128xf32>,
    return
  }
  func.func @transform_0(%arg0: i32, %arg1: i32) -> (i32, i32, i32) {
    %c0_i32 = arith.constant 0 : i32
    %c0_i32_0 = arith.constant 0 : i32
    return %c0_i32, %arg1, %arg0 : i32, i32, i32
  }
  func.func @transform_1(%arg0: i32, %arg1: i32) -> (i32, i32) {
    %c0_i32 = arith.constant 0 : i32
    %c0_i32_0 = arith.constant 0 : i32
    return %c0_i32, %arg1 : i32, i32
  }
  func.func @transform_2(%arg0: i32, %arg1: i32) -> (i32, i32) {
    %c0_i32 = arith.constant 0 : i32
    %c0_i32_0 = arith.constant 0 : i32
    return %c0_i32, %arg0 : i32, i32
  }
}

</mosaic_0001>

<llo_original>
// kernel: tpu_custom_call.1
$region0: #{tpu_custom_call.1}
  #allocation0 [shape = 'u32[]', space=smem, size = 0x4, offset = 0x4, fixed_abs, tag = 'smem constant byte address 0x4 - core index']
  #allocation1 [shape = 'u32[72,128]{1,0:T(1,128)}', space=vmem, size = 0x9000, scoped, tag = 'internal scratch']
  %s0 = inlined_call_operand.vmem [shape: f32[2,200,192], index: 0, kind: input, shape index: {}]
  %s1 = inlined_call_operand.vmem [shape: f32[2,256], index: 1, kind: input, shape index: {}]
  %s2 = inlined_call_operand.hbm [shape: f32[2,192], index: 2, kind: output, shape index: {}]
  %s3 = sld [smem:[#allocation0]]
  $region97: #{tpu_custom_call.1} parent=0
    _
  %s5 = ssub.s32 1, %s3
  %s6 = scalar_select 0, %s5, %s3
  $region1: #{tpu_custom_call.1} parent=0
    #allocation2 [shape = 'u8[262144]{0}', space=vmem, size = 0x40000, scoped, tag = 'input window, operand 0']
    #allocation3 [shape = 'u8[2048]{0}', space=vmem, size = 0x800, scoped, tag = 'output window, operand 0']
    #allocation4 [shape = 's32[2]{0}', space=sflag, size = 0x8, scoped, tag = 'scoped memory for tpu_custom_call.1']
    %7 = vsyncpa [#allocation4], 0
    %s8 = scalar_lea.sflag [#allocation4], 1
    %9 = vsyncpa %s8, 0
    loop: start=0, step=1, limit=6
    $region2: #{tpu_custom_call.1} parent=1 // loop_pre_header
      _
    $region3: #{tpu_custom_call.1} parent=1 // loop_header
      %s11 = sphi 0, %s15
      %p12 = scmp.ge.s32.totalorder %s11, 6
      %s18 = sphi 0, %s30
      %s19 = sphi 0, %s26
      %s20 = sphi 0, %s18
      %s21 = sphi 0, %s19
      %s22 = sphi 0, %s20
      %s23 = sphi 0, %s21
      %s35 = sphi 0, %s37
      %s38 = sphi 0, %s35
      %s39 = sphi 0, %s38
      %s55 = sphi 0, %s39
      %s61 = sphi 0, %s63
      %s64 = sphi 0, %s61
      %s65 = sphi 0, %s64
      %s81 = sphi 0, %s65
      %s87 = sphi 0, %s89
      %s90 = sphi 0, %s87
      %s91 = sphi 0, %s90
      %s107 = sphi 0, %s91
    $region4: #{tpu_custom_call.1} parent=1 // loop_header_branch
      %14 = sbr.rel (%p12) target = $region8
    $region5: #{tpu_custom_call.1} parent=1 // loop_body
      %s16 = ssub.s32 %s11, 1
      %s17 = ssub.s32 %s11, 2
      %s24 = sadd.s32 1, %s19
      %p25 = scmp.ge.s32.totalorder %s24, 2
      %s26 = scalar_select %p25, 0, %s24
      %s27 = sadd.s32 1, %s18
      %s28 = scalar_select %p25, %s27, %s18
      %p29 = scmp.ge.s32.totalorder %s28, 2
      %s30 = scalar_select %p29, 0, %s28
      %s31 = ssub.s32 %s19, %s26
      %s32 = ssub.s32 %s18, %s30
      %s33 = sor.u32 %s31, %s32
      %p34 = scmp.eq.s32.totalorder %s33, 0
      %s36 = sadd.s32 %s35, 1
      %s37 = scalar_select %p34, %s35, %s36
      %p40 = pneg %p34
      %p41 = scmp.eq.s32.totalorder %s11, 3
      %p42 = por %p40, %p41
      %p43 = scmp.ne.s32.totalorder %s35, %s38
      %p44 = scmp.eq.s32.totalorder %s11, 0
      %p45 = por %p43, %p44
      %p46 = scmp.ne.s32.totalorder %s35, %s38
      %p47 = scmp.eq.s32.totalorder %s16, 3
      %p48 = por %p46, %p47
      %p49 = scmp.ne.s32.totalorder %s38, %s39
      %p50 = scmp.eq.s32.totalorder %s16, 0
      %p51 = por %p49, %p50
      %p52 = scmp.ne.s32.totalorder %s38, %s39
      %p53 = scmp.eq.s32.totalorder %s17, 3
      %p54 = por %p52, %p53
      %p56 = scmp.ne.s32.totalorder %s39, %s55
      %p57 = scmp.eq.s32.totalorder %s17, 0
      %p58 = por %p56, %p57
      %s59 = ssub.s32 %s19, %s26
      %p60 = scmp.eq.s32.totalorder %s59, 0
      %s62 = sadd.s32 %s61, 1
      %s63 = scalar_select %p60, %s61, %s62
      %p66 = pneg %p60
      %p67 = scmp.eq.s32.totalorder %s11, 3
      %p68 = por %p66, %p67
      %p69 = scmp.ne.s32.totalorder %s61, %s64
      %p70 = scmp.eq.s32.totalorder %s11, 0
      %p71 = por %p69, %p70
      %p72 = scmp.ne.s32.totalorder %s61, %s64
      %p73 = scmp.eq.s32.totalorder %s16, 3
      %p74 = por %p72, %p73
      %p75 = scmp.ne.s32.totalorder %s64, %s65
      %p76 = scmp.eq.s32.totalorder %s16, 0
      %p77 = por %p75, %p76
      %p78 = scmp.ne.s32.totalorder %s64, %s65
      %p79 = scmp.eq.s32.totalorder %s17, 3
      %p80 = por %p78, %p79
      %p82 = scmp.ne.s32.totalorder %s65, %s81
      %p83 = scmp.eq.s32.totalorder %s17, 0
      %p84 = por %p82, %p83
      %s85 = ssub.s32 %s18, %s30
      %p86 = scmp.eq.s32.totalorder %s85, 0
      %s88 = sadd.s32 %s87, 1
      %s89 = scalar_select %p86, %s87, %s88
      %p92 = pneg %p86
      %p93 = scmp.eq.s32.totalorder %s11, 3
      %p94 = por %p92, %p93
      %p95 = scmp.ne.s32.totalorder %s87, %s90
      %p96 = scmp.eq.s32.totalorder %s11, 0
      %p97 = por %p95, %p96
      %p98 = scmp.ne.s32.totalorder %s87, %s90
      %p99 = scmp.eq.s32.totalorder %s16, 3
      %p100 = por %p98, %p99
      %p101 = scmp.ne.s32.totalorder %s90, %s91
      %p102 = scmp.eq.s32.totalorder %s16, 0
      %p103 = por %p101, %p102
      %p104 = scmp.ne.s32.totalorder %s90, %s91
      %p105 = scmp.eq.s32.totalorder %s17, 3
      %p106 = por %p104, %p105
      %p108 = scmp.ne.s32.totalorder %s91, %s107
      %p109 = scmp.eq.s32.totalorder %s17, 0
      %p110 = por %p108, %p109
      %p111 = scmp.le.s32.totalorder 1, %s11
      %p112 = scmp.lt.s32.totalorder %s11, 5
      %p113 = pnand %p111, %p112
      %p114 = pneg %p113
      // Predicated region
      $region9: #{tpu_custom_call.1} parent=5 // pred_check
        _
      $region10: #{tpu_custom_call.1} parent=5 // pred_check_branch
        %116 = sbr.rel (%p113) target = $region12
      $region11: #{tpu_custom_call.1} parent=5 // pred_region
        %s117 = ssub.s32 %s11, 1
      $region12: #{tpu_custom_call.1} parent=5 // pred_fallthru
        _
      %p118 = scmp.lt.s32.totalorder %s11, 4
      // Predicated region
      $region13: #{tpu_custom_call.1} parent=5 // pred_check
        %p119 = pneg %p118
      $region14: #{tpu_custom_call.1} parent=5 // pred_check_branch
        %121 = sbr.rel (%p119) target = $region16
      $region15: #{tpu_custom_call.1} parent=5 // pred_region
        // Predicated region
        $region17: #{tpu_custom_call.1} parent=15 // pred_check
          %p122 = pneg %p45
        $region18: #{tpu_custom_call.1} parent=15 // pred_check_branch
          %124 = sbr.rel (%p122) target = $region20
        $region19: #{tpu_custom_call.1} parent=15 // pred_region
          %s125 = sand.u32 %s35, 1
          %s126 = sand.u32 %s35, 1
          %s127 = smul.addr %s126, 256
          %s128 = scalar_lea.vmem [#allocation2], %s127
          %s129 = smul.u32 16, %s19
          %s130 = ssub.s32 25, %s129
          %p131 = scmp.lt.s32.totalorder %s130, 16
          %s132 = scalar_select %p131, %s130, 16
          %s133 = smul.u32 16, %s132
          %p134 = scmp.ne.s32.totalorder 0, %s133
          %s135 = smul.addr %s129, 2
          %s136 = sadd.s32 %s18, %s135
          %s137 = smul.addr %s136, 8
          %s138 = scalar_lea.vmem %s0, %s137
          // Predicated region
          $region21: #{tpu_custom_call.1} parent=19 // pred_check
            %p139 = pneg %p134
          $region22: #{tpu_custom_call.1} parent=19 // pred_check_branch
            %141 = sbr.rel (%p139) target = $region24
          $region23: #{tpu_custom_call.1} parent=19 // pred_region
            // Predicated region
            $region25: #{tpu_custom_call.1} parent=23 // pred_check
              _
            $region26: #{tpu_custom_call.1} parent=23 // pred_check_branch
              %143 = sbr.rel (0) target = $region28
            $region27: #{tpu_custom_call.1} parent=23 // pred_region
              // Predicated region
              $region47: #{tpu_custom_call.1} parent=27 // pred_check
                _
              $region48: #{tpu_custom_call.1} parent=27 // pred_check_branch
                %257 = sbr.rel (0) target = $region50
              $region49: #{tpu_custom_call.1} parent=27 // pred_region
                %s258 = sshrl.u32 %s132, 4
                // While loop
                $region51: #{tpu_custom_call.1} parent=49 // loop_pre_header
                  _
                $region52: #{tpu_custom_call.1} parent=49 // loop_header
                  %s260 = sphi 0, %s262
                  %p261 = scmp.ge.s32.totalorder %s260, %s258
                  %s265 = sphi 0, %s334
                  %s266 = sphi %s138, %s337
                  %s267 = sphi %s128, %s338
                $region53: #{tpu_custom_call.1} parent=49 // loop_header_branch
                  %264 = sbr.rel (%p261) target = $region57
                $region54: #{tpu_custom_call.1} parent=49 // loop_body
                  %v268 = vld [vmem:[%s266] sm:$0xff]
                  %269 = vst [vmem:[%s267] sm:$0xff] %v268
                  %v270 = vld [vmem:[%s266 + $0x10] sm:$0xff]
                  %271 = vst [vmem:[%s267 + $0x8] sm:$0xff] %v270
                  %v272 = vld [vmem:[%s266 + $0x20] sm:$0xff]
                  %273 = vst [vmem:[%s267 + $0x10] sm:$0xff] %v272
                  %v274 = vld [vmem:[%s266 + $0x30] sm:$0xff]
                  %275 = vst [vmem:[%s267 + $0x18] sm:$0xff] %v274
                  %v276 = vld [vmem:[%s266 + $0x40] sm:$0xff]
                  %277 = vst [vmem:[%s267 + $0x20] sm:$0xff] %v276
                  %v278 = vld [vmem:[%s266 + $0x50] sm:$0xff]
                  %279 = vst [vmem:[%s267 + $0x28] sm:$0xff] %v278
                  %v280 = vld [vmem:[%s266 + $0x60] sm:$0xff]
                  %281 = vst [vmem:[%s267 + $0x30] sm:$0xff] %v280
                  %v282 = vld [vmem:[%s266 + $0x70] sm:$0xff]
                  %283 = vst [vmem:[%s267 + $0x38] sm:$0xff] %v282
                  %v284 = vld [vmem:[%s266 + $0x80] sm:$0xff]
                  %285 = vst [vmem:[%s267 + $0x40] sm:$0xff] %v284
                  %v286 = vld [vmem:[%s266 + $0x90] sm:$0xff]
                  %287 = vst [vmem:[%s267 + $0x48] sm:$0xff] %v286
                  %v288 = vld [vmem:[%s266 + $0xa0] sm:$0xff]
                  %289 = vst [vmem:[%s267 + $0x50] sm:$0xff] %v288
                  %v290 = vld [vmem:[%s266 + $0xb0] sm:$0xff]
                  %291 = vst [vmem:[%s267 + $0x58] sm:$0xff] %v290
                  %v292 = vld [vmem:[%s266 + $0xc0] sm:$0xff]
                  %293 = vst [vmem:[%s267 + $0x60] sm:$0xff] %v292
                  %v294 = vld [vmem:[%s266 + $0xd0] sm:$0xff]
                  %295 = vst [vmem:[%s267 + $0x68] sm:$0xff] %v294
                  %v296 = vld [vmem:[%s266 + $0xe0] sm:$0xff]
                  %297 = vst [vmem:[%s267 + $0x70] sm:$0xff] %v296
                  %v298 = vld [vmem:[%s266 + $0xf0] sm:$0xff]
                  %299 = vst [vmem:[%s267 + $0x78] sm:$0xff] %v298
                  %v300 = vld [vmem:[%s266 + $0x190] sm:$0xff]
                  %301 = vst [vmem:[%s267 + $0x80] sm:$0xff] %v300
                  %v302 = vld [vmem:[%s266 + $0x1a0] sm:$0xff]
                  %303 = vst [vmem:[%s267 + $0x88] sm:$0xff] %v302
                  %v304 = vld [vmem:[%s266 + $0x1b0] sm:$0xff]
                  %305 = vst [vmem:[%s267 + $0x90] sm:$0xff] %v304
                  %v306 = vld [vmem:[%s266 + $0x1c0] sm:$0xff]
                  %307 = vst [vmem:[%s267 + $0x98] sm:$0xff] %v306
                  %v308 = vld [vmem:[%s266 + $0x1d0] sm:$0xff]
                  %309 = vst [vmem:[%s267 + $0xa0] sm:$0xff] %v308
                  %v310 = vld [vmem:[%s266 + $0x1e0] sm:$0xff]
                  %311 = vst [vmem:[%s267 + $0xa8] sm:$0xff] %v310
                  %v312 = vld [vmem:[%s266 + $0x1f0] sm:$0xff]
                  %313 = vst [vmem:[%s267 + $0xb0] sm:$0xff] %v312
                  %v314 = vld [vmem:[%s266 + $0x200] sm:$0xff]
                  %315 = vst [vmem:[%s267 + $0xb8] sm:$0xff] %v314
                  %v316 = vld [vmem:[%s266 + $0x210] sm:$0xff]
                  %317 = vst [vmem:[%s267 + $0xc0] sm:$0xff] %v316
                  %v318 = vld [vmem:[%s266 + $0x220] sm:$0xff]
                  %319 = vst [vmem:[%s267 + $0xc8] sm:$0xff] %v318
                  %v320 = vld [vmem:[%s266 + $0x230] sm:$0xff]
                  %321 = vst [vmem:[%s267 + $0xd0] sm:$0xff] %v320
                  %v322 = vld [vmem:[%s266 + $0x240] sm:$0xff]
                  %323 = vst [vmem:[%s267 + $0xd8] sm:$0xff] %v322
                  %v324 = vld [vmem:[%s266 + $0x250] sm:$0xff]
                  %325 = vst [vmem:[%s267 + $0xe0] sm:$0xff] %v324
                  %v326 = vld [vmem:[%s266 + $0x260] sm:$0xff]
                  %327 = vst [vmem:[%s267 + $0xe8] sm:$0xff] %v326
                  %v328 = vld [vmem:[%s266 + $0x270] sm:$0xff]
                  %329 = vst [vmem:[%s267 + $0xf0] sm:$0xff] %v328
                  %v330 = vld [vmem:[%s266 + $0x280] sm:$0xff]
                  %331 = vst [vmem:[%s267 + $0xf8] sm:$0xff] %v330
                  %s332 = sadd.s32 1, %s265
                  %p333 = scmp.ge.s32.totalorder %s332, %s258
                  %s334 = scalar_select %p333, 0, %s332
                  %s335 = smul.u32 %s334, 256
                  %s336 = smul.u32 %s334, 128
                  %s337 = scalar_lea.vmem %s138, %s335
                  %s338 = scalar_lea.vmem %s128, %s336 [#allocation2]
                $region55: #{tpu_custom_call.1} parent=49 // loop_footer
                  %s262 = sadd.s32 %s260, 1
                $region56: #{tpu_custom_call.1} parent=49 // loop_footer_branch
                  %259 = sbr.rel target = $region52
                $region57: #{tpu_custom_call.1} parent=49 // loop_exit
                  _
                %s339 = sshrl.u32 %s132, 4
                %s340 = sand.u32 %s132, 15
                %s341 = smul.u32 %s339, 16
                %s342 = smul.u32 16, %s341
                %s343 = scalar_lea.vmem %s138, %s342
                %s344 = smul.u32 8, %s341
                %s345 = scalar_lea.vmem %s128, %s344 [#allocation2]
                // While loop
                $region58: #{tpu_custom_call.1} parent=49 // loop_pre_header
                  _
                $region59: #{tpu_custom_call.1} parent=49 // loop_header
                  %s347 = sphi 0, %s349
                  %p348 = scmp.ge.s32.totalorder %s347, %s340
                  %s352 = sphi 0, %s361
                  %s353 = sphi %s343, %s364
                  %s354 = sphi %s345, %s365
                $region60: #{tpu_custom_call.1} parent=49 // loop_header_branch
                  %351 = sbr.rel (%p348) target = $region64
                $region61: #{tpu_custom_call.1} parent=49 // loop_body
                  %v355 = vld [vmem:[%s353] sm:$0xff]
                  %356 = vst [vmem:[%s354] sm:$0xff] %v355
                  %v357 = vld [vmem:[%s353 + $0x190] sm:$0xff]
                  %358 = vst [vmem:[%s354 + $0x80] sm:$0xff] %v357
                  %s359 = sadd.s32 1, %s352
                  %p360 = scmp.ge.s32.totalorder %s359, %s340
                  %s361 = scalar_select %p360, 0, %s359
                  %s362 = smul.u32 %s361, 16
                  %s363 = smul.u32 %s361, 8
                  %s364 = scalar_lea.vmem %s343, %s362
                  %s365 = scalar_lea.vmem %s345, %s363 [#allocation2]
                $region62: #{tpu_custom_call.1} parent=49 // loop_footer
                  %s349 = sadd.s32 %s347, 1
                $region63: #{tpu_custom_call.1} parent=49 // loop_footer_branch
                  %346 = sbr.rel target = $region59
                $region64: #{tpu_custom_call.1} parent=49 // loop_exit
                  _
              $region50: #{tpu_custom_call.1} parent=27 // pred_fallthru
                _
              // Predicated region
              $region65: #{tpu_custom_call.1} parent=27 // pred_check
                _
              $region66: #{tpu_custom_call.1} parent=27 // pred_check_branch
                %367 = sbr.rel target = $region68
              $region67: #{tpu_custom_call.1} parent=27 // pred_region
                _
              $region68: #{tpu_custom_call.1} parent=27 // pred_fallthru
                _
            $region28: #{tpu_custom_call.1} parent=23 // pred_fallthru
              _
            // Predicated region
            $region29: #{tpu_custom_call.1} parent=23 // pred_check
              _
            $region30: #{tpu_custom_call.1} parent=23 // pred_check_branch
              %145 = sbr.rel target = $region32
            $region31: #{tpu_custom_call.1} parent=23 // pred_region
              %s147 = ssub.s32 256, 1
              %s148 = sshrl.u32 %s132, 4
              // While loop
              $region33: #{tpu_custom_call.1} parent=31 // loop_pre_header
                _
              $region34: #{tpu_custom_call.1} parent=31 // loop_header
                %s150 = sphi 0, %s152
                %p151 = scmp.ge.s32.totalorder %s150, %s148
                %s155 = sphi 0, %s224
                %s156 = sphi %s138, %s227
                %s157 = sphi %s128, %s228
              $region35: #{tpu_custom_call.1} parent=31 // loop_header_branch
                %154 = sbr.rel (%p151) target = $region39
              $region36: #{tpu_custom_call.1} parent=31 // loop_body
                %v158 = vld [vmem:[%s156] sm:%s147]
                %159 = vst [vmem:[%s157] sm:%s147] %v158
                %v160 = vld [vmem:[%s156 + $0x10] sm:%s147]
                %161 = vst [vmem:[%s157 + $0x8] sm:%s147] %v160
                %v162 = vld [vmem:[%s156 + $0x20] sm:%s147]
                %163 = vst [vmem:[%s157 + $0x10] sm:%s147] %v162
                %v164 = vld [vmem:[%s156 + $0x30] sm:%s147]
                %165 = vst [vmem:[%s157 + $0x18] sm:%s147] %v164
                %v166 = vld [vmem:[%s156 + $0x40] sm:%s147]
                %167 = vst [vmem:[%s157 + $0x20] sm:%s147] %v166
                %v168 = vld [vmem:[%s156 + $0x50] sm:%s147]
                %169 = vst [vmem:[%s157 + $0x28] sm:%s147] %v168
                %v170 = vld [vmem:[%s156 + $0x60] sm:%s147]
                %171 = vst [vmem:[%s157 + $0x30] sm:%s147] %v170
                %v172 = vld [vmem:[%s156 + $0x70] sm:%s147]
                %173 = vst [vmem:[%s157 + $0x38] sm:%s147] %v172
                %v174 = vld [vmem:[%s156 + $0x80] sm:%s147]
                %175 = vst [vmem:[%s157 + $0x40] sm:%s147] %v174
                %v176 = vld [vmem:[%s156 + $0x90] sm:%s147]
                %177 = vst [vmem:[%s157 + $0x48] sm:%s147] %v176
                %v178 = vld [vmem:[%s156 + $0xa0] sm:%s147]
                %179 = vst [vmem:[%s157 + $0x50] sm:%s147] %v178
                %v180 = vld [vmem:[%s156 + $0xb0] sm:%s147]
                %181 = vst [vmem:[%s157 + $0x58] sm:%s147] %v180
                %v182 = vld [vmem:[%s156 + $0xc0] sm:%s147]
                %183 = vst [vmem:[%s157 + $0x60] sm:%s147] %v182
                %v184 = vld [vmem:[%s156 + $0xd0] sm:%s147]
                %185 = vst [vmem:[%s157 + $0x68] sm:%s147] %v184
                %v186 = vld [vmem:[%s156 + $0xe0] sm:%s147]
                %187 = vst [vmem:[%s157 + $0x70] sm:%s147] %v186
                %v188 = vld [vmem:[%s156 + $0xf0] sm:%s147]
                %189 = vst [vmem:[%s157 + $0x78] sm:%s147] %v188
                %v190 = vld [vmem:[%s156 + $0x190] sm:%s147]
                %191 = vst [vmem:[%s157 + $0x80] sm:%s147] %v190
                %v192 = vld [vmem:[%s156 + $0x1a0] sm:%s147]
                %193 = vst [vmem:[%s157 + $0x88] sm:%s147] %v192
                %v194 = vld [vmem:[%s156 + $0x1b0] sm:%s147]
                %195 = vst [vmem:[%s157 + $0x90] sm:%s147] %v194
                %v196 = vld [vmem:[%s156 + $0x1c0] sm:%s147]
                %197 = vst [vmem:[%s157 + $0x98] sm:%s147] %v196
                %v198 = vld [vmem:[%s156 + $0x1d0] sm:%s147]
                %199 = vst [vmem:[%s157 + $0xa0] sm:%s147] %v198
                %v200 = vld [vmem:[%s156 + $0x1e0] sm:%s147]
                %201 = vst [vmem:[%s157 + $0xa8] sm:%s147] %v200
                %v202 = vld [vmem:[%s156 + $0x1f0] sm:%s147]
                %203 = vst [vmem:[%s157 + $0xb0] sm:%s147] %v202
                %v204 = vld [vmem:[%s156 + $0x200] sm:%s147]
                %205 = vst [vmem:[%s157 + $0xb8] sm:%s147] %v204
                %v206 = vld [vmem:[%s156 + $0x210] sm:%s147]
                %207 = vst [vmem:[%s157 + $0xc0] sm:%s147] %v206
                %v208 = vld [vmem:[%s156 + $0x220] sm:%s147]
                %209 = vst [vmem:[%s157 + $0xc8] sm:%s147] %v208
                %v210 = vld [vmem:[%s156 + $0x230] sm:%s147]
                %211 = vst [vmem:[%s157 + $0xd0] sm:%s147] %v210
                %v212 = vld [vmem:[%s156 + $0x240] sm:%s147]
                %213 = vst [vmem:[%s157 + $0xd8] sm:%s147] %v212
                %v214 = vld [vmem:[%s156 + $0x250] sm:%s147]
                %215 = vst [vmem:[%s157 + $0xe0] sm:%s147] %v214
                %v216 = vld [vmem:[%s156 + $0x260] sm:%s147]
                %217 = vst [vmem:[%s157 + $0xe8] sm:%s147] %v216
                %v218 = vld [vmem:[%s156 + $0x270] sm:%s147]
                %219 = vst [vmem:[%s157 + $0xf0] sm:%s147] %v218
                %v220 = vld [vmem:[%s156 + $0x280] sm:%s147]
                %221 = vst [vmem:[%s157 + $0xf8] sm:%s147] %v220
                %s222 = sadd.s32 1, %s155
                %p223 = scmp.ge.s32.totalorder %s222, %s148
                %s224 = scalar_select %p223, 0, %s222
                %s225 = smul.u32 %s224, 256
                %s226 = smul.u32 %s224, 128
                %s227 = scalar_lea.vmem %s138, %s225
                %s228 = scalar_lea.vmem %s128, %s226 [#allocation2]
              $region37: #{tpu_custom_call.1} parent=31 // loop_footer
                %s152 = sadd.s32 %s150, 1
              $region38: #{tpu_custom_call.1} parent=31 // loop_footer_branch
                %149 = sbr.rel target = $region34
              $region39: #{tpu_custom_call.1} parent=31 // loop_exit
                _
              %s229 = sshrl.u32 %s132, 4
              %s230 = sand.u32 %s132, 15
              %s231 = smul.u32 %s229, 16
              %s232 = smul.u32 16, %s231
              %s233 = scalar_lea.vmem %s138, %s232
              %s234 = smul.u32 8, %s231
              %s235 = scalar_lea.vmem %s128, %s234 [#allocation2]
              // While loop
              $region40: #{tpu_custom_call.1} parent=31 // loop_pre_header
                _
              $region41: #{tpu_custom_call.1} parent=31 // loop_header
                %s237 = sphi 0, %s239
                %p238 = scmp.ge.s32.totalorder %s237, %s230
                %s242 = sphi 0, %s251
                %s243 = sphi %s233, %s254
                %s244 = sphi %s235, %s255
              $region42: #{tpu_custom_call.1} parent=31 // loop_header_branch
                %241 = sbr.rel (%p238) target = $region46
              $region43: #{tpu_custom_call.1} parent=31 // loop_body
                %v245 = vld [vmem:[%s243] sm:%s147]
                %246 = vst [vmem:[%s244] sm:%s147] %v245
                %v247 = vld [vmem:[%s243 + $0x190] sm:%s147]
                %248 = vst [vmem:[%s244 + $0x80] sm:%s147] %v247
                %s249 = sadd.s32 1, %s242
                %p250 = scmp.ge.s32.totalorder %s249, %s230
                %s251 = scalar_select %p250, 0, %s249
                %s252 = smul.u32 %s251, 16
                %s253 = smul.u32 %s251, 8
                %s254 = scalar_lea.vmem %s233, %s252
                %s255 = scalar_lea.vmem %s235, %s253 [#allocation2]
              $region44: #{tpu_custom_call.1} parent=31 // loop_footer
                %s239 = sadd.s32 %s237, 1
              $region45: #{tpu_custom_call.1} parent=31 // loop_footer_branch
                %236 = sbr.rel target = $region41
              $region46: #{tpu_custom_call.1} parent=31 // loop_exit
                _
            $region32: #{tpu_custom_call.1} parent=23 // pred_fallthru
              _
          $region24: #{tpu_custom_call.1} parent=19 // pred_fallthru
            _
          %368 = vnop
        $region20: #{tpu_custom_call.1} parent=15 // pred_fallthru
          _
        // Predicated region
        $region69: #{tpu_custom_call.1} parent=15 // pred_check
          %p369 = pneg %p71
        $region70: #{tpu_custom_call.1} parent=15 // pred_check_branch
          %371 = sbr.rel (%p369) target = $region72
        $region71: #{tpu_custom_call.1} parent=15 // pred_region
          %p372 = scmp.lt.s32.totalorder %s19, 1
          %s373 = scalar_select %p372, %s19, 1
          %s374 = smul.addr %s373, 2
          %s375 = scalar_lea.vmem %s1, %s374
        $region72: #{tpu_custom_call.1} parent=15 // pred_fallthru
          _
      $region16: #{tpu_custom_call.1} parent=5 // pred_fallthru
        _
      %p376 = scmp.le.s32.totalorder 1, %s11
      %p377 = scmp.lt.s32.totalorder %s11, 5
      %p378 = pnand %p376, %p377
      %p379 = pneg %p378
      // Predicated region
      $region73: #{tpu_custom_call.1} parent=5 // pred_check
        _
      $region74: #{tpu_custom_call.1} parent=5 // pred_check_branch
        %381 = sbr.rel (%p378) target = $region76
      $region75: #{tpu_custom_call.1} parent=5 // pred_region
        %s382 = ssub.s32 %s11, 1
        %s383 = sand.u32 %s38, 1
        %s384 = sand.u32 %s38, 1
        %s385 = smul.addr %s384, 256
        %s386 = scalar_lea.vmem [#allocation2], %s385
        // Predicated region
        $region77: #{tpu_custom_call.1} parent=75 // pred_check
          %p387 = pneg %p51
        $region78: #{tpu_custom_call.1} parent=75 // pred_check_branch
          %389 = sbr.rel (%p387) target = $region80
        $region79: #{tpu_custom_call.1} parent=75 // pred_region
          _
        $region80: #{tpu_custom_call.1} parent=75 // pred_fallthru
          _
        %s390 = sand.u32 %s38, 1
        %s391 = sand.u32 %s38, 1
        %s392 = smul.addr %s391, 256
        %s393 = scalar_lea.vmem [#allocation2], %s392
        %p394 = pneg %p51
        %p395 = pneg %p48
        %p396 = scmp.lt.s32.totalorder %s21, 1
        %s397 = scalar_select %p396, %s21, 1
        %s398 = smul.addr %s397, 2
        %s399 = scalar_lea.vmem %s1, %s398
        %p400 = pneg %p77
        %p401 = pneg %p74
        %p402 = pneg %p103
        %p403 = pneg %p100
        %s404 = sand.u32 %s90, 1
        %s405 = scalar_lea.sflag [#allocation4], %s404
        %s406 = sand.u32 %s90, 1
        %s407 = smul.addr %s406, 2
        %s408 = scalar_lea.vmem [#allocation3], %s407
        %s409 = smul.u32 16, %s21
        %s410 = ssub.s32 25, %s409
        %p411 = scmp.lt.s32.totalorder %s410, 16
        %s412 = scalar_select %p411, %s410, 16
        %s413 = smul.u32 16, %s412
        %p414 = scmp.lt.s32.totalorder %s21, 1
        %s415 = scalar_select %p414, %s21, 1
        %s416 = smul.addr %s415, 2
        %s417 = scalar_lea.vmem %s1, %s416
        %p418 = scmp.eq.s32.totalorder %s21, 0
        // Predicated region
        $region81: #{tpu_custom_call.1} parent=75 // pred_check
          %p419 = pneg %p418
        $region82: #{tpu_custom_call.1} parent=75 // pred_check_branch
          %421 = sbr.rel (%p419) target = $region84
        $region83: #{tpu_custom_call.1} parent=75 // pred_region
          %422 = vst [vmem:[%s408] sm:$0x3] 0.0
        $region84: #{tpu_custom_call.1} parent=75 // pred_fallthru
          _
        %v423 = vld [vmem:[%s417] sm:$0x3]
        %v424 = vld [vmem:[%s386] sm:$0xff]
        %v425 = vld [vmem:[%s386 + $0x8] sm:$0xff]
        %v426 = vld [vmem:[%s386 + $0x10] sm:$0xff]
        %v427 = vld [vmem:[%s386 + $0x18] sm:$0xff]
        %v428 = vld [vmem:[%s386 + $0x20] sm:$0xff]
        %v429 = vld [vmem:[%s386 + $0x28] sm:$0xff]
        %v430 = vld [vmem:[%s386 + $0x30] sm:$0xff]
        %v431 = vld [vmem:[%s386 + $0x38] sm:$0xff]
        %v432 = vld [vmem:[%s386 + $0x40] sm:$0xff]
        %v433 = vld [vmem:[%s386 + $0x48] sm:$0xff]
        %v434 = vld [vmem:[%s386 + $0x50] sm:$0xff]
        %v435 = vld [vmem:[%s386 + $0x58] sm:$0xff]
        %v436 = vld [vmem:[%s386 + $0x60] sm:$0xff]
        %v437 = vld [vmem:[%s386 + $0x68] sm:$0xff]
        %v438 = vld [vmem:[%s386 + $0x70] sm:$0xff]
        %v439 = vld [vmem:[%s386 + $0x78] sm:$0xff]
        %v440 = vld [vmem:[%s386 + $0x80] sm:$0xff]
        %v441 = vld [vmem:[%s386 + $0x88] sm:$0xff]
        %v442 = vld [vmem:[%s386 + $0x90] sm:$0xff]
        %v443 = vld [vmem:[%s386 + $0x98] sm:$0xff]
        %v444 = vld [vmem:[%s386 + $0xa0] sm:$0xff]
        %v445 = vld [vmem:[%s386 + $0xa8] sm:$0xff]
        %v446 = vld [vmem:[%s386 + $0xb0] sm:$0xff]
        %v447 = vld [vmem:[%s386 + $0xb8] sm:$0xff]
        %v448 = vld [vmem:[%s386 + $0xc0] sm:$0xff]
        %v449 = vld [vmem:[%s386 + $0xc8] sm:$0xff]
        %v450 = vld [vmem:[%s386 + $0xd0] sm:$0xff]
        %v451 = vld [vmem:[%s386 + $0xd8] sm:$0xff]
        %v452 = vld [vmem:[%s386 + $0xe0] sm:$0xff]
        %v453 = vld [vmem:[%s386 + $0xe8] sm:$0xff]
        %v454 = vld [vmem:[%s386 + $0xf0] sm:$0xff]
        %v455 = vld [vmem:[%s386 + $0xf8] sm:$0xff]
        %v456 = vperm.slane %v423, 0
        %v457 = vlaneseq
        %v458 = vshrl.u32 %v457, 7
        %460 = vset.pattern.permute.xlu0 %v458
        %461 = vperm.xlu0 %460, %v456
        %v462 = vpop.permute.xlu0 %461
        %v463 = vlaneseq
        %v464 = vshrl.u32 %v463, 7
        %v465 = vadd.s32 %v464, 8
        %466 = vset.pattern.permute.xlu0 %v465
        %467 = vperm.xlu0 %466, %v456
        %v468 = vpop.permute.xlu0 %467
        %v469 = vlaneseq
        %v470 = vshrl.u32 %v469, 7
        %v471 = vadd.s32 %v470, 16
        %472 = vset.pattern.permute.xlu0 %v471
        %473 = vperm.xlu0 %472, %v456
        %v474 = vpop.permute.xlu0 %473
        %v475 = vlaneseq
        %v476 = vshrl.u32 %v475, 7
        %v477 = vadd.s32 %v476, 24
        %478 = vset.pattern.permute.xlu0 %v477
        %479 = vperm.xlu0 %478, %v456
        %v480 = vpop.permute.xlu0 %479
        %v481 = vlaneseq
        %v482 = vshrl.u32 %v481, 7
        %v483 = vadd.s32 %v482, 32
        %484 = vset.pattern.permute.xlu0 %v483
        %485 = vperm.xlu0 %484, %v456
        %v486 = vpop.permute.xlu0 %485
        %v487 = vlaneseq
        %v488 = vshrl.u32 %v487, 7
        %v489 = vadd.s32 %v488, 40
        %490 = vset.pattern.permute.xlu0 %v489
        %491 = vperm.xlu0 %490, %v456
        %v492 = vpop.permute.xlu0 %491
        %v493 = vlaneseq
        %v494 = vshrl.u32 %v493, 7
        %v495 = vadd.s32 %v494, 48
        %496 = vset.pattern.permute.xlu0 %v495
        %497 = vperm.xlu0 %496, %v456
        %v498 = vpop.permute.xlu0 %497
        %v499 = vlaneseq
        %v500 = vshrl.u32 %v499, 7
        %v501 = vadd.s32 %v500, 56
        %502 = vset.pattern.permute.xlu0 %v501
        %503 = vperm.xlu0 %502, %v456
        %v504 = vpop.permute.xlu0 %503
        %v505 = vlaneseq
        %v506 = vshrl.u32 %v505, 7
        %v507 = vadd.s32 %v506, 64
        %508 = vset.pattern.permute.xlu0 %v507
        %509 = vperm.xlu0 %508, %v456
        %v510 = vpop.permute.xlu0 %509
        %v511 = vlaneseq
        %v512 = vshrl.u32 %v511, 7
        %v513 = vadd.s32 %v512, 72
        %514 = vset.pattern.permute.xlu0 %v513
        %515 = vperm.xlu0 %514, %v456
        %v516 = vpop.permute.xlu0 %515
        %v517 = vlaneseq
        %v518 = vshrl.u32 %v517, 7
        %v519 = vadd.s32 %v518, 80
        %520 = vset.pattern.permute.xlu0 %v519
        %521 = vperm.xlu0 %520, %v456
        %v522 = vpop.permute.xlu0 %521
        %v523 = vlaneseq
        %v524 = vshrl.u32 %v523, 7
        %v525 = vadd.s32 %v524, 88
        %526 = vset.pattern.permute.xlu0 %v525
        %527 = vperm.xlu0 %526, %v456
        %v528 = vpop.permute.xlu0 %527
        %v529 = vlaneseq
        %v530 = vshrl.u32 %v529, 7
        %v531 = vadd.s32 %v530, 96
        %532 = vset.pattern.permute.xlu0 %v531
        %533 = vperm.xlu0 %532, %v456
        %v534 = vpop.permute.xlu0 %533
        %v535 = vlaneseq
        %v536 = vshrl.u32 %v535, 7
        %v537 = vadd.s32 %v536, 104
        %538 = vset.pattern.permute.xlu0 %v537
        %539 = vperm.xlu0 %538, %v456
        %v540 = vpop.permute.xlu0 %539
        %v541 = vlaneseq
        %v542 = vshrl.u32 %v541, 7
        %v543 = vadd.s32 %v542, 112
        %544 = vset.pattern.permute.xlu0 %v543
        %545 = vperm.xlu0 %544, %v456
        %v546 = vpop.permute.xlu0 %545
        %v547 = vlaneseq
        %v548 = vshrl.u32 %v547, 7
        %v549 = vadd.s32 %v548, 120
        %550 = vset.pattern.permute.xlu0 %v549
        %551 = vperm.xlu0 %550, %v456
        %v552 = vpop.permute.xlu0 %551
        %v553 = vperm.slane %v423, 1
        %v554 = vlaneseq
        %v555 = vshrl.u32 %v554, 7
        %557 = vset.pattern.permute.xlu0 %v555
        %558 = vperm.xlu0 %557, %v553
        %v559 = vpop.permute.xlu0 %558
        %v560 = vlaneseq
        %v561 = vshrl.u32 %v560, 7
        %v562 = vadd.s32 %v561, 8
        %563 = vset.pattern.permute.xlu0 %v562
        %564 = vperm.xlu0 %563, %v553
        %v565 = vpop.permute.xlu0 %564
        %v566 = vlaneseq
        %v567 = vshrl.u32 %v566, 7
        %v568 = vadd.s32 %v567, 16
        %569 = vset.pattern.permute.xlu0 %v568
        %570 = vperm.xlu0 %569, %v553
        %v571 = vpop.permute.xlu0 %570
        %v572 = vlaneseq
        %v573 = vshrl.u32 %v572, 7
        %v574 = vadd.s32 %v573, 24
        %575 = vset.pattern.permute.xlu0 %v574
        %576 = vperm.xlu0 %575, %v553
        %v577 = vpop.permute.xlu0 %576
        %v578 = vlaneseq
        %v579 = vshrl.u32 %v578, 7
        %v580 = vadd.s32 %v579, 32
        %581 = vset.pattern.permute.xlu0 %v580
        %582 = vperm.xlu0 %581, %v553
        %v583 = vpop.permute.xlu0 %582
        %v584 = vlaneseq
        %v585 = vshrl.u32 %v584, 7
        %v586 = vadd.s32 %v585, 40
        %587 = vset.pattern.permute.xlu0 %v586
        %588 = vperm.xlu0 %587, %v553
        %v589 = vpop.permute.xlu0 %588
        %v590 = vlaneseq
        %v591 = vshrl.u32 %v590, 7
        %v592 = vadd.s32 %v591, 48
        %593 = vset.pattern.permute.xlu0 %v592
        %594 = vperm.xlu0 %593, %v553
        %v595 = vpop.permute.xlu0 %594
        %v596 = vlaneseq
        %v597 = vshrl.u32 %v596, 7
        %v598 = vadd.s32 %v597, 56
        %599 = vset.pattern.permute.xlu0 %v598
        %600 = vperm.xlu0 %599, %v553
        %v601 = vpop.permute.xlu0 %600
        %v602 = vlaneseq
        %v603 = vshrl.u32 %v602, 7
        %v604 = vadd.s32 %v603, 64
        %605 = vset.pattern.permute.xlu0 %v604
        %606 = vperm.xlu0 %605, %v553
        %v607 = vpop.permute.xlu0 %606
        %v608 = vlaneseq
        %v609 = vshrl.u32 %v608, 7
        %v610 = vadd.s32 %v609, 72
        %611 = vset.pattern.permute.xlu0 %v610
        %612 = vperm.xlu0 %611, %v553
        %v613 = vpop.permute.xlu0 %612
        %v614 = vlaneseq
        %v615 = vshrl.u32 %v614, 7
        %v616 = vadd.s32 %v615, 80
        %617 = vset.pattern.permute.xlu0 %v616
        %618 = vperm.xlu0 %617, %v553
        %v619 = vpop.permute.xlu0 %618
        %v620 = vlaneseq
        %v621 = vshrl.u32 %v620, 7
        %v622 = vadd.s32 %v621, 88
        %623 = vset.pattern.permute.xlu0 %v622
        %624 = vperm.xlu0 %623, %v553
        %v625 = vpop.permute.xlu0 %624
        %v626 = vlaneseq
        %v627 = vshrl.u32 %v626, 7
        %v628 = vadd.s32 %v627, 96
        %629 = vset.pattern.permute.xlu0 %v628
        %630 = vperm.xlu0 %629, %v553
        %v631 = vpop.permute.xlu0 %630
        %v632 = vlaneseq
        %v633 = vshrl.u32 %v632, 7
        %v634 = vadd.s32 %v633, 104
        %635 = vset.pattern.permute.xlu0 %v634
        %636 = vperm.xlu0 %635, %v553
        %v637 = vpop.permute.xlu0 %636
        %v638 = vlaneseq
        %v639 = vshrl.u32 %v638, 7
        %v640 = vadd.s32 %v639, 112
        %641 = vset.pattern.permute.xlu0 %v640
        %642 = vperm.xlu0 %641, %v553
        %v643 = vpop.permute.xlu0 %642
        %v644 = vlaneseq
        %v645 = vshrl.u32 %v644, 7
        %v646 = vadd.s32 %v645, 120
        %647 = vset.pattern.permute.xlu0 %v646
        %648 = vperm.xlu0 %647, %v553
        %v649 = vpop.permute.xlu0 %648
        %vm650 = vcmp.ne.f32.partialorder %v462, 0.0
        %vm651 = vcmp.ne.f32.partialorder %v468, 0.0
        %vm652 = vcmp.ne.f32.partialorder %v474, 0.0
        %vm653 = vcmp.ne.f32.partialorder %v480, 0.0
        %vm654 = vcmp.ne.f32.partialorder %v486, 0.0
        %vm655 = vcmp.ne.f32.partialorder %v492, 0.0
        %vm656 = vcmp.ne.f32.partialorder %v498, 0.0
        %vm657 = vcmp.ne.f32.partialorder %v504, 0.0
        %vm658 = vcmp.ne.f32.partialorder %v510, 0.0
        %vm659 = vcmp.ne.f32.partialorder %v516, 0.0
        %vm660 = vcmp.ne.f32.partialorder %v522, 0.0
        %vm661 = vcmp.ne.f32.partialorder %v528, 0.0
        %vm662 = vcmp.ne.f32.partialorder %v534, 0.0
        %vm663 = vcmp.ne.f32.partialorder %v540, 0.0
        %vm664 = vcmp.ne.f32.partialorder %v546, 0.0
        %vm665 = vcmp.ne.f32.partialorder %v552, 0.0
        %vm666 = vcmp.ne.f32.partialorder %v559, 0.0
        %vm667 = vcmp.ne.f32.partialorder %v565, 0.0
        %vm668 = vcmp.ne.f32.partialorder %v571, 0.0
        %vm669 = vcmp.ne.f32.partialorder %v577, 0.0
        %vm670 = vcmp.ne.f32.partialorder %v583, 0.0
        %vm671 = vcmp.ne.f32.partialorder %v589, 0.0
        %vm672 = vcmp.ne.f32.partialorder %v595, 0.0
        %vm673 = vcmp.ne.f32.partialorder %v601, 0.0
        %vm674 = vcmp.ne.f32.partialorder %v607, 0.0
        %vm675 = vcmp.ne.f32.partialorder %v613, 0.0
        %vm676 = vcmp.ne.f32.partialorder %v619, 0.0
        %vm677 = vcmp.ne.f32.partialorder %v625, 0.0
        %vm678 = vcmp.ne.f32.partialorder %v631, 0.0
        %vm679 = vcmp.ne.f32.partialorder %v637, 0.0
        %vm680 = vcmp.ne.f32.partialorder %v643, 0.0
        %vm681 = vcmp.ne.f32.partialorder %v649, 0.0
        %v682 = vsel %vm650, 1, 0
        %v683 = vsel %vm651, 1, 0
        %v684 = vsel %vm652, 1, 0
        %v685 = vsel %vm653, 1, 0
        %v686 = vsel %vm654, 1, 0
        %v687 = vsel %vm655, 1, 0
        %v688 = vsel %vm656, 1, 0
        %v689 = vsel %vm657, 1, 0
        %v690 = vsel %vm658, 1, 0
        %v691 = vsel %vm659, 1, 0
        %v692 = vsel %vm660, 1, 0
        %v693 = vsel %vm661, 1, 0
        %v694 = vsel %vm662, 1, 0
        %v695 = vsel %vm663, 1, 0
        %v696 = vsel %vm664, 1, 0
        %v697 = vsel %vm665, 1, 0
        %v698 = vsel %vm666, 1, 0
        %v699 = vsel %vm667, 1, 0
        %v700 = vsel %vm668, 1, 0
        %v701 = vsel %vm669, 1, 0
        %v702 = vsel %vm670, 1, 0
        %v703 = vsel %vm671, 1, 0
        %v704 = vsel %vm672, 1, 0
        %v705 = vsel %vm673, 1, 0
        %v706 = vsel %vm674, 1, 0
        %v707 = vsel %vm675, 1, 0
        %v708 = vsel %vm676, 1, 0
        %v709 = vsel %vm677, 1, 0
        %v710 = vsel %vm678, 1, 0
        %v711 = vsel %vm679, 1, 0
        %v712 = vsel %vm680, 1, 0
        %v713 = vsel %vm681, 1, 0
        %vm714 = vcmp.eq.s32.totalorder %v682, 1
        %vm715 = vcmp.eq.s32.totalorder %v683, 1
        %vm716 = vcmp.eq.s32.totalorder %v684, 1
        %vm717 = vcmp.eq.s32.totalorder %v685, 1
        %vm718 = vcmp.eq.s32.totalorder %v686, 1
        %vm719 = vcmp.eq.s32.totalorder %v687, 1
        %vm720 = vcmp.eq.s32.totalorder %v688, 1
        %vm721 = vcmp.eq.s32.totalorder %v689, 1
        %vm722 = vcmp.eq.s32.totalorder %v690, 1
        %vm723 = vcmp.eq.s32.totalorder %v691, 1
        %vm724 = vcmp.eq.s32.totalorder %v692, 1
        %vm725 = vcmp.eq.s32.totalorder %v693, 1
        %vm726 = vcmp.eq.s32.totalorder %v694, 1
        %vm727 = vcmp.eq.s32.totalorder %v695, 1
        %vm728 = vcmp.eq.s32.totalorder %v696, 1
        %vm729 = vcmp.eq.s32.totalorder %v697, 1
        %vm730 = vcmp.eq.s32.totalorder %v698, 1
        %vm731 = vcmp.eq.s32.totalorder %v699, 1
        %vm732 = vcmp.eq.s32.totalorder %v700, 1
        %vm733 = vcmp.eq.s32.totalorder %v701, 1
        %vm734 = vcmp.eq.s32.totalorder %v702, 1
        %vm735 = vcmp.eq.s32.totalorder %v703, 1
        %vm736 = vcmp.eq.s32.totalorder %v704, 1
        %vm737 = vcmp.eq.s32.totalorder %v705, 1
        %vm738 = vcmp.eq.s32.totalorder %v706, 1
        %vm739 = vcmp.eq.s32.totalorder %v707, 1
        %vm740 = vcmp.eq.s32.totalorder %v708, 1
        %vm741 = vcmp.eq.s32.totalorder %v709, 1
        %vm742 = vcmp.eq.s32.totalorder %v710, 1
        %vm743 = vcmp.eq.s32.totalorder %v711, 1
        %vm744 = vcmp.eq.s32.totalorder %v712, 1
        %vm745 = vcmp.eq.s32.totalorder %v713, 1
        %v746 = vsel %vm714, %v424, 0.0
        %v747 = vsel %vm715, %v425, 0.0
        %v748 = vsel %vm716, %v426, 0.0
        %v749 = vsel %vm717, %v427, 0.0
        %v750 = vsel %vm718, %v428, 0.0
        %v751 = vsel %vm719, %v429, 0.0
        %v752 = vsel %vm720, %v430, 0.0
        %v753 = vsel %vm721, %v431, 0.0
        %v754 = vsel %vm722, %v432, 0.0
        %v755 = vsel %vm723, %v433, 0.0
        %v756 = vsel %vm724, %v434, 0.0
        %v757 = vsel %vm725, %v435, 0.0
        %v758 = vsel %vm726, %v436, 0.0
        %v759 = vsel %vm727, %v437, 0.0
        %v760 = vsel %vm728, %v438, 0.0
        %v761 = vsel %vm729, %v439, 0.0
        %v762 = vsel %vm730, %v440, 0.0
        %v763 = vsel %vm731, %v441, 0.0
        %v764 = vsel %vm732, %v442, 0.0
        %v765 = vsel %vm733, %v443, 0.0
        %v766 = vsel %vm734, %v444, 0.0
        %v767 = vsel %vm735, %v445, 0.0
        %v768 = vsel %vm736, %v446, 0.0
        %v769 = vsel %vm737, %v447, 0.0
        %v770 = vsel %vm738, %v448, 0.0
        %v771 = vsel %vm739, %v449, 0.0
        %v772 = vsel %vm740, %v450, 0.0
        %v773 = vsel %vm741, %v451, 0.0
        %v774 = vsel %vm742, %v452, 0.0
        %v775 = vsel %vm743, %v453, 0.0
        %v776 = vsel %vm744, %v454, 0.0
        %v777 = vsel %vm745, %v455, 0.0
        %v779 = vrot.slane %v423, 1
        %781 = vmatpush.msra.mxu0 %v761
        %782 = vmatpush.msra.mxu0 %v760
        %783 = vmatpush.msra.mxu0 %v759
        %784 = vmatpush.msra.mxu0 %v758
        %785 = vmatpush.msra.mxu0 %v757
        %786 = vmatpush.msra.mxu0 %v756
        %787 = vmatpush.msra.mxu0 %v755
        %788 = vmatpush.msra.mxu0 %v754
        %789 = vmatpush.msra.mxu0 %v753
        %790 = vmatpush.msra.mxu0 %v752
        %791 = vmatpush.msra.mxu0 %v751
        %792 = vmatpush.msra.mxu0 %v750
        %793 = vmatpush.msra.mxu0 %v749
        %794 = vmatpush.msra.mxu0 %v748
        %795 = vmatpush.msra.mxu0 %v747
        %796 = vmatpush.msra.mxu0 %v746
        %797 = vmatmul.f32.gmra.mxu0 %v423
        %v798 = vpop.f32.mrf.mxu0
        %v799 = vadd.f32 0.0, %v798
        %800 = vdwg.mxu0
        %801 = vmatpush.msra.mxu0 %v777
        %802 = vmatpush.msra.mxu0 %v776
        %803 = vmatpush.msra.mxu0 %v775
        %804 = vmatpush.msra.mxu0 %v774
        %805 = vmatpush.msra.mxu0 %v773
        %806 = vmatpush.msra.mxu0 %v772
        %807 = vmatpush.msra.mxu0 %v771
        %808 = vmatpush.msra.mxu0 %v770
        %809 = vmatpush.msra.mxu0 %v769
        %810 = vmatpush.msra.mxu0 %v768
        %811 = vmatpush.msra.mxu0 %v767
        %812 = vmatpush.msra.mxu0 %v766
        %813 = vmatpush.msra.mxu0 %v765
        %814 = vmatpush.msra.mxu0 %v764
        %815 = vmatpush.msra.mxu0 %v763
        %816 = vmatpush.msra.mxu0 %v762
        %817 = vmatmul.f32.gmra.mxu0 %v779
        %v818 = vpop.f32.mrf.mxu0
        %v819 = vadd.f32 0.0, %v818
        %820 = vdwg.mxu0
        %v821 = vld [vmem:[%s408] sm:$0x3]
        %v824 = vrot.slane %v819, 7
        %vm825 = vcmask 1041409
        %v826 = vsel %vm825, %v824, %v799
        %v828 = vadd.f32 %v821, %v826
        %829 = vst [vmem:[%s408] sm:$0x3] %v828
        %s830 = sand.u32 %s90, 1
        %s831 = scalar_lea.sflag [#allocation4], %s830
        %s832 = sand.u32 %s90, 1
        %s833 = smul.addr %s832, 2
        %s834 = scalar_lea.vmem [#allocation3], %s833
        // Predicated region
        $region85: #{tpu_custom_call.1} parent=75 // pred_check
          %p835 = pneg %p100
        $region86: #{tpu_custom_call.1} parent=75 // pred_check_branch
          %837 = sbr.rel (%p835) target = $region88
        $region87: #{tpu_custom_call.1} parent=75 // pred_region
          %839 = vsyncadd %s831, 0
          %s840 = smul.addr %s20, 2
          %s841 = scalar_lea.hbm %s2, %s840
          %s843 = sshll.u32 %s834, 4
          %s844 = int_to_ptr.vmem [resolvable:$true] %s843
          %s845 = sshll.u32 %s841, 4
          %s846 = int_to_ptr.hbm [resolvable:$true] %s845
          %848 = dma.vmem_to_hbm [thread:$0]  %s844, 32, %s846, %s831
        $region88: #{tpu_custom_call.1} parent=75 // pred_fallthru
          _
      $region76: #{tpu_custom_call.1} parent=5 // pred_fallthru
        _
      %p849 = scmp.le.s32.totalorder 2, %s11
      // Predicated region
      $region89: #{tpu_custom_call.1} parent=5 // pred_check
        %p850 = pneg %p849
      $region90: #{tpu_custom_call.1} parent=5 // pred_check_branch
        %852 = sbr.rel (%p850) target = $region92
      $region91: #{tpu_custom_call.1} parent=5 // pred_region
        %s853 = ssub.s32 %s11, 2
        // Predicated region
        $region93: #{tpu_custom_call.1} parent=91 // pred_check
          %p854 = pneg %p106
        $region94: #{tpu_custom_call.1} parent=91 // pred_check_branch
          %856 = sbr.rel (%p854) target = $region96
        $region95: #{tpu_custom_call.1} parent=91 // pred_region
          %s857 = sand.u32 %s91, 1
          %s858 = scalar_lea.sflag [#allocation4], %s857
          %s859 = sand.u32 %s91, 1
          %s860 = smul.addr %s859, 2
          %s861 = scalar_lea.vmem [#allocation3], %s860
          %863 = dma.done %s858, 32
        $region96: #{tpu_custom_call.1} parent=91 // pred_fallthru
          _
      $region92: #{tpu_custom_call.1} parent=5 // pred_fallthru
        _
    $region6: #{tpu_custom_call.1} parent=1 // loop_footer
      %s15 = sadd.s32 1, %s11
    $region7: #{tpu_custom_call.1} parent=1 // loop_footer_branch
      %10 = sbr.rel target = $region3
    $region8: #{tpu_custom_call.1} parent=1 // loop_exit
      _
    %864 = vsyncpa [#allocation4], 1
    %s865 = scalar_lea.sflag [#allocation4], 1
    %866 = vsyncpa %s865, 1

</llo_original>
